<compile_context>
chip_gen: v7x
topology: tpu7x:2x2x1
jax: 0.10.0
libtpu: 0.0.40
codegen_flags: <defaults>
</compile_context>

<pallas_src>
import functools

import jax
import jax.numpy as jnp
from jax.experimental import pallas as pl
from jax.experimental.pallas import tpu as pltpu

EPS = 1e-5


def _round_up(x, m):
    return ((x + m - 1) // m) * m


def _vmem_physical_bytes():
    """Physical VMEM per core; falls back to the v7x-safe 64 MiB."""
    try:
        info = pltpu.get_tpu_info()
        for attr in ("vmem_capacity_bytes", "vmem_bytes", "vmem_size_bytes"):
            v = getattr(info, attr, None)
            if v:
                return int(v)
    except Exception:
        pass
    return 64 << 20


def _patch_embed_kernel(x_ref, w_ref, vec_ref, o_ref, *, d_out):
    """Fused LayerNorm -> 1x1 conv (matmul) -> LayerNorm over one token tile.

    x_ref:   (tm, d_in)         tokens x unfolded-patch channels (f32)
    w_ref:   (d_in, d_out_pad)  conv weight with LN1 affine folded in
                                (f32 or bf16), zero-padded columns beyond d_out
    vec_ref: (3, d_out_pad)     rows = [conv bias + folded LN1 shift, g2, b2],
                                zero-padded columns
    o_ref:   (tm, d_out_pad)
    """
    x = x_ref[...].astype(jnp.float32)

    # --- LayerNorm 1 (affine folded into the weight), two-pass stats --------
    mean1 = jnp.mean(x, axis=-1, keepdims=True)
    xc = x - mean1
    var1 = jnp.mean(xc * xc, axis=-1, keepdims=True)
    xn = xc * jax.lax.rsqrt(var1 + EPS)

    # --- 1x1 Conv2d == per-token matmul over channels (MXU) -----------------
    w = w_ref[...]
    y = jnp.dot(xn.astype(w.dtype), w, preferred_element_type=jnp.float32)

    vec = vec_ref[...].astype(jnp.float32)
    bias = vec[0:1, :]
    g2 = vec[1:2, :]
    b2 = vec[2:3, :]
    y = y + bias

    # --- LayerNorm 2 over the *real* d_out channels --------------------------
    # Padded columns of y are exactly zero (zero weight cols + zero bias), so
    # the mean over the padded lane width equals the mean over real columns.
    # The centered sum-of-squares is masked to the real columns.
    d_out_pad = y.shape[-1]
    inv_d = 1.0 / d_out
    mean2 = jnp.sum(y, axis=-1, keepdims=True) * inv_d
    yc = y - mean2
    if d_out_pad != d_out:
        col = jax.lax.broadcasted_iota(jnp.int32, y.shape, 1)
        yc_sq = jnp.where(col < d_out, yc * yc, 0.0)
    else:
        yc_sq = yc * yc
    var2 = jnp.sum(yc_sq, axis=-1, keepdims=True) * inv_d
    yn = yc * jax.lax.rsqrt(var2 + EPS)

    # g2/b2 padded columns are zero -> padded output columns stay exactly zero.
    o_ref[...] = (yn * g2 + b2).astype(o_ref.dtype)


def patch_embedding_forward(fmap, params, *, patch_size, tm=None,
                            mxu_dtype=jnp.bfloat16, out_dtype=None,
                            out_layout="NCHW"):
    """fmap: (B, C, H, W) NCHW.  Returns NCHW (B, dim_out, H//p, W//p) by
    default, or NHWC when out_layout == "NHWC" (saves one output relayout)."""
    w, bias, g1, b1, g2, b2 = (params[k] for k in ("w", "bias", "g1", "b1", "g2", "b2"))
    B, C, H, W = fmap.shape
    p = patch_size
    Hs, Ws = H // p, W // p
    d_in = C * p * p
    d_out = w.shape[1]
    out_dtype = fmap.dtype if out_dtype is None else out_dtype

    # Fold LN1 affine + conv bias into the weight (numerically identical):
    #   (norm(x)*g1 + b1) @ w + bias == norm(x) @ (g1^T * w) + (b1 @ w + bias)
    w_f = w.astype(jnp.float32) * g1.reshape(d_in, 1).astype(jnp.float32)
    bias_f = (jnp.dot(b1.astype(jnp.float32), w.astype(jnp.float32),
                      precision=jax.lax.Precision.HIGHEST)
              + bias.astype(jnp.float32))                        # (1, d_out)

    # Lane-pad dim_out to a multiple of 128 so output stores are lane-dense.
    d_out_pad = _round_up(d_out, 128)
    n_pad = d_out_pad - d_out
    g2f = g2.astype(jnp.float32)
    b2f = b2.astype(jnp.float32)
    if n_pad:
        w_f = jnp.pad(w_f, ((0, 0), (0, n_pad)))
        bias_f = jnp.pad(bias_f, ((0, 0), (0, n_pad)))
        g2f = jnp.pad(g2f, ((0, 0), (0, n_pad)))
        b2f = jnp.pad(b2f, ((0, 0), (0, n_pad)))
    # Single (3, d_out_pad) vector operand: rows = [bias', g2, b2] -> one DMA.
    vec = jnp.concatenate([bias_f, g2f, b2f], axis=0)

    # Cast the weight once in the wrapper: halves its HBM->VMEM DMA / VMEM
    # footprint and removes the per-grid-step VPU cast.  LN math stays f32.
    if mxu_dtype is not None:
        w_f = w_f.astype(mxu_dtype)

    # rearrange 'b c (h p1) (w p2) -> b (c p1 p2) h w', flattened to tokens.
    # Pre-materialized as a contiguous (n_tok, d_in) slab so each token-tile
    # fill is one contiguous DMA instead of p-element strided reads.
    # TODO(synk): benchmark allow_input_fusion of this transpose vs. the slab.
    x = fmap.reshape(B, C, Hs, p, Ws, p)
    tokens = jnp.transpose(x, (0, 2, 4, 1, 3, 5)).reshape(B * Hs * Ws, d_in)
    n_tok = B * Hs * Ws

    # VMEM limit: ~75% of physical (48 MiB on v7x, 96 MiB on v5e/v6e).
    vmem_limit = int(min(int(0.75 * _vmem_physical_bytes()), 112 << 20))

    w_bytes = 2 if mxu_dtype is not None else 4
    out_bytes = jnp.dtype(out_dtype).itemsize
    if tm is None:
        # Amortize the ~0.35us per-grid-step cost: move >= ~4 MiB per step.
        hbm_per_tok = 4 * d_in + out_bytes * d_out_pad
        tm = min(_round_up(max(512, (4 << 20) // max(hbm_per_tok, 1)), 8), 4096)
        # VMEM ceiling: double-buffered in/out tiles + in-kernel f32 temporaries
        # against single-buffered weight/vec, with ~30% compiler-scratch headroom.
        fixed = d_in * d_out_pad * w_bytes + 3 * d_out_pad * 4
        per_tok_vmem = (2 * d_in * 4 + 2 * d_out_pad * out_bytes
                        + 3 * (d_in + d_out_pad) * 4)
        tm_vmem = max(8, ((int(0.7 * vmem_limit) - fixed) // per_tok_vmem) // 8 * 8)
        tm = min(tm, tm_vmem)
        # Keep >= ~4 grid steps so the "parallel" axis can feed both v7x cores.
        if n_tok >= 4 * 512:
            tm = min(tm, _round_up(pl.cdiv(n_tok, 4), 8))
    tm = max(8, min(_round_up(tm, 8), _round_up(n_tok, 8)))
    grid = pl.cdiv(n_tok, tm)          # ragged last block handled by Pallas

    out = pl.pallas_call(
        functools.partial(_patch_embed_kernel, d_out=d_out),
        out_shape=jax.ShapeDtypeStruct((n_tok, d_out_pad), out_dtype),
        grid_spec=pltpu.PrefetchScalarGridSpec(
            num_scalar_prefetch=0,
            grid=(grid,),
            in_specs=[
                pl.BlockSpec((tm, d_in), lambda i: (i, 0)),            # tokens
                pl.BlockSpec((d_in, d_out_pad), lambda i: (0, 0),      # folded weight
                             pipeline_mode=pl.Buffered(1)),
                pl.BlockSpec((3, d_out_pad), lambda i: (0, 0),         # bias / g2 / b2
                             pipeline_mode=pl.Buffered(1)),
            ],
            out_specs=pl.BlockSpec((tm, d_out_pad), lambda i: (i, 0)),
        ),
        compiler_params=pltpu.CompilerParams(
            dimension_semantics=("parallel",),
            vmem_limit_bytes=vmem_limit,
        ),
    )(tokens, w_f, vec)

    out = out[:, :d_out].reshape(B, Hs, Ws, d_out)
    if out_layout == "NHWC":
        return out
    return jnp.transpose(out, (0, 3, 1, 2))   # NCHW to match the PyTorch module


def _reference(fmap, params, *, patch_size):
    """Pure-JAX reference mirroring the PyTorch forward."""
    w, bias, g1, b1, g2, b2 = (params[k] for k in ("w", "bias", "g1", "b1", "g2", "b2"))
    B, C, H, W = fmap.shape
    p = patch_size
    Hs, Ws = H // p, W // p
    x = fmap.reshape(B, C, Hs, p, Ws, p).transpose(0, 1, 3, 5, 2, 4)
    x = x.reshape(B, C * p * p, Hs, Ws)

    def ln(x, g, b):          # x: (B, D, h, w), norm over D
        mean = jnp.mean(x, axis=1, keepdims=True)
        var = jnp.mean((x - mean) ** 2, axis=1, keepdims=True)
        return (x - mean) / jnp.sqrt(var + EPS) * g[None, :, None, None] + b[None, :, None, None]

    x = ln(x, g1[0], b1[0])
    x = jnp.einsum('bdhw,de->behw', x, w,
                   precision=jax.lax.Precision.HIGHEST) + bias[0][None, :, None, None]
    return ln(x, g2[0], b2[0])


if __name__ == "__main__":
    key = jax.random.PRNGKey(0)
    B, C, H, W = 2, 4, 16, 16
    patch_size = 2
    dim_out = 32
    d_in = patch_size ** 2 * C

    k1, k2, k3 = jax.random.split(key, 3)
    fmap = jax.random.normal(k1, (B, C, H, W), dtype=jnp.float32)

    k4, k5, k6, k7 = jax.random.split(jax.random.PRNGKey(1), 4)
    params = {
        # Conv2d(d_in, dim_out, 1): weight (dim_out, d_in, 1, 1) stored as (d_in, dim_out)
        "w": 0.1 * jax.random.normal(k2, (d_in, dim_out), dtype=jnp.float32),
        "bias": 0.1 * jax.random.normal(k3, (1, dim_out), dtype=jnp.float32),
        # Non-trivial LN affines to exercise the wrapper-side fold.
        "g1": 1.0 + 0.1 * jax.random.normal(k4, (1, d_in), jnp.float32),
        "b1": 0.1 * jax.random.normal(k5, (1, d_in), jnp.float32),
        "g2": 1.0 + 0.1 * jax.random.normal(k6, (1, dim_out), jnp.float32),
        "b2": 0.1 * jax.random.normal(k7, (1, dim_out), jnp.float32),
    }

    ref = _reference(fmap, params, patch_size=patch_size)

    # 1) Default path: bf16 MXU operands, auto-sized token tile.
    fwd_bf16 = jax.jit(functools.partial(patch_embedding_forward, patch_size=patch_size))
    out_bf16 = jax.block_until_ready(fwd_bf16(fmap, params))
    assert out_bf16.shape == (B, dim_out, H // patch_size, W // patch_size), out_bf16.shape
    assert jnp.allclose(out_bf16, ref, atol=5e-2, rtol=5e-2), \
        float(jnp.max(jnp.abs(out_bf16 - ref)))

    # 2) Exact f32-MXU path: tight tolerance against the reference.
    fwd_f32 = jax.jit(functools.partial(patch_embedding_forward,
                                        patch_size=patch_size, mxu_dtype=None))
    out_f32 = jax.block_until_ready(fwd_f32(fmap, params))
    assert jnp.allclose(out_f32, ref, atol=1e-4, rtol=1e-4), \
        float(jnp.max(jnp.abs(out_f32 - ref)))

    # 3) NHWC output path (skips the final NCHW relayout).
    fwd_nhwc = jax.jit(functools.partial(patch_embedding_forward,
                                         patch_size=patch_size, mxu_dtype=None,
                                         out_layout="NHWC"))
    out_nhwc = jax.block_until_ready(fwd_nhwc(fmap, params))
    assert jnp.allclose(out_nhwc, jnp.transpose(ref, (0, 2, 3, 1)), atol=1e-4, rtol=1e-4)

    # 4) Multi-block + ragged-last-block path with a small explicit tile.
    fwd_small = jax.jit(functools.partial(patch_embedding_forward,
                                          patch_size=patch_size, mxu_dtype=None, tm=16))
    fmap2 = jax.random.normal(jax.random.PRNGKey(2), (1, C, 12, 12), dtype=jnp.float32)
    ref2 = _reference(fmap2, params, patch_size=patch_size)
    out2 = jax.block_until_ready(fwd_small(fmap2, params))   # n_tok=36, tm=16 -> ragged
    assert jnp.allclose(out2, ref2, atol=1e-4, rtol=1e-4), \
        float(jnp.max(jnp.abs(out2 - ref2)))

    print("KERNEL_OK")
</pallas_src>

<mosaic_0001>
module attributes {stable_mosaic.version = 11 : i64} {
  func.func @_patch_embed_kernel(%arg0: i32, %arg1: memref<128x16xf32, #tpu.memory_space<vmem>>, %arg2: memref<16x128xbf16, #tpu.memory_space<vmem>>, %arg3: memref<3x128xf32, #tpu.memory_space<vmem>>, %arg4: memref<128x128xf32, #tpu.memory_space<vmem>>) attributes {dimension_semantics = [#tpu.dimension_semantics<parallel>], iteration_bounds = array<i64: 1>, scalar_prefetch = 0 : i64, scratch_operands = 0 : i64, tpu.core_type = #tpu.core_type<tc>, window_params = [{transform_indices = @transform_0, window_bounds = array<i64: 128, 16>}, {pipeline_mode = #tpu.pipeline_mode<synchronous>, transform_indices = @transform_1, window_bounds = array<i64: 16, 128>}, {pipeline_mode = #tpu.pipeline_mode<synchronous>, transform_indices = @transform_2, window_bounds = array<i64: 3, 128>}, {transform_indices = @transform_3, window_bounds = array<i64: 128, 128>}]} {
    %c0 = arith.constant 0 : index
    %c0_0 = arith.constant 0 : index
    %0 = vector.load %arg1[%c0, %c0_0] : memref<128x16xf32, #tpu.memory_space<vmem>>, vector<128x16xf32>
    %cst = arith.constant dense<0.000000e+00> : vector<128xf32>
    %1 = vector.multi_reduction <add>, %0, %cst [1] : vector<128x16xf32> to vector<128xf32>
    %2 = vector.shape_cast %1 : vector<128xf32> to vector<128x1xf32>
    %cst_1 = arith.constant 1.600000e+01 : f32
    %3 = vector.broadcast %cst_1 : f32 to vector<128x1xf32>
    %4 = arith.divf %2, %3 : vector<128x1xf32>
    %5 = vector.broadcast %4 : vector<128x1xf32> to vector<128x16xf32>
    %6 = arith.subf %0, %5 : vector<128x16xf32>
    %7 = arith.mulf %6, %6 : vector<128x16xf32>
    %cst_2 = arith.constant dense<0.000000e+00> : vector<128xf32>
    %8 = vector.multi_reduction <add>, %7, %cst_2 [1] : vector<128x16xf32> to vector<128xf32>
    %9 = vector.shape_cast %8 : vector<128xf32> to vector<128x1xf32>
    %cst_3 = arith.constant 1.600000e+01 : f32
    %10 = vector.broadcast %cst_3 : f32 to vector<128x1xf32>
    %11 = arith.divf %9, %10 : vector<128x1xf32>
    %cst_4 = arith.constant 9.99999974E-6 : f32
    %12 = vector.broadcast %cst_4 : f32 to vector<128x1xf32>
    %13 = arith.addf %11, %12 : vector<128x1xf32>
    %14 = math.rsqrt %13 : vector<128x1xf32>
    %15 = vector.broadcast %14 : vector<128x1xf32> to vector<128x16xf32>
    %16 = arith.mulf %6, %15 : vector<128x16xf32>
    %c0_5 = arith.constant 0 : index
    %c0_6 = arith.constant 0 : index
    %17 = vector.load %arg2[%c0_5, %c0_6] : memref<16x128xbf16, #tpu.memory_space<vmem>>, vector<16x128xbf16>
    %18 = arith.truncf %16 : vector<128x16xf32> to vector<128x16xbf16>
    %cst_7 = arith.constant dense<0.000000e+00> : vector<128x128xf32>
    %19 = tpu.matmul %18, %17, %cst_7 {dimension_numbers = #tpu.dot_dimension_numbers<[1], [0], [0], [1], [0, 0, 1, 1], [], []>} : vector<128x16xbf16>, vector<16x128xbf16>, vector<128x128xf32> -> vector<128x128xf32>
    %c0_8 = arith.constant 0 : index
    %c0_9 = arith.constant 0 : index
    %20 = vector.load %arg3[%c0_8, %c0_9] : memref<3x128xf32, #tpu.memory_space<vmem>>, vector<3x128xf32>
    %21 = vector.extract_strided_slice %20 {offsets = [0, 0], sizes = [1, 128], strides = [1, 1]} : vector<3x128xf32> to vector<1x128xf32>
    %22 = vector.extract_strided_slice %20 {offsets = [1, 0], sizes = [1, 128], strides = [1, 1]} : vector<3x128xf32> to vector<1x128xf32>
    %23 = vector.extract_strided_slice %20 {offsets = [2, 0], sizes = [1, 128], strides = [1, 1]} : vector<3x128xf32> to vector<1x128xf32>
    %24 = vector.broadcast %21 : vector<1x128xf32> to vector<128x128xf32>
    %25 = arith.addf %19, %24 : vector<128x128xf32>
    %cst_10 = arith.constant dense<0.000000e+00> : vector<128xf32>
    %26 = vector.multi_reduction <add>, %25, %cst_10 [1] : vector<128x128xf32> to vector<128xf32>
    %27 = vector.shape_cast %26 : vector<128xf32> to vector<128x1xf32>
    %cst_11 = arith.constant 3.125000e-02 : f32
    %28 = vector.broadcast %cst_11 : f32 to vector<128x1xf32>
    %29 = arith.mulf %27, %28 : vector<128x1xf32>
    %30 = vector.broadcast %29 : vector<128x1xf32> to vector<128x128xf32>
    %31 = arith.subf %25, %30 : vector<128x128xf32>
    %32 = tpu.iota {dimensions = array<i32: 1>} : vector<128x128xi32>
    %c32_i32 = arith.constant 32 : i32
    %33 = vector.broadcast %c32_i32 : i32 to vector<128x128xi32>
    %34 = arith.cmpi slt, %32, %33 : vector<128x128xi32>
    %35 = arith.mulf %31, %31 : vector<128x128xf32>
    %cst_12 = arith.constant 0.000000e+00 : f32
    %36 = vector.broadcast %cst_12 : f32 to vector<128x128xf32>
    %37 = arith.select %34, %35, %36 : vector<128x128xi1>, vector<128x128xf32>
    %cst_13 = arith.constant dense<0.000000e+00> : vector<128xf32>
    %38 = vector.multi_reduction <add>, %37, %cst_13 [1] : vector<128x128xf32> to vector<128xf32>
    %39 = vector.shape_cast %38 : vector<128xf32> to vector<128x1xf32>
    %cst_14 = arith.constant 3.125000e-02 : f32
    %40 = vector.broadcast %cst_14 : f32 to vector<128x1xf32>
    %41 = arith.mulf %39, %40 : vector<128x1xf32>
    %cst_15 = arith.constant 9.99999974E-6 : f32
    %42 = vector.broadcast %cst_15 : f32 to vector<128x1xf32>
    %43 = arith.addf %41, %42 : vector<128x1xf32>
    %44 = math.rsqrt %43 : vector<128x1xf32>
    %45 = vector.broadcast %44 : vector<128x1xf32> to vector<128x128xf32>
    %46 = arith.mulf %31, %45 : vector<128x128xf32>
    %47 = vector.broadcast %22 : vector<1x128xf32> to vector<128x128xf32>
    %48 = arith.mulf %46, %47 : vector<128x128xf32>
    %49 = vector.broadcast %23 : vector<1x128xf32> to vector<128x128xf32>
    %50 = arith.addf %48, %49 : vector<128x128xf32>
    %c0_16 = arith.constant 0 : index
    %c0_17 = arith.constant 0 : index
    %51 = vector.load %arg4[%c0_16, %c0_17] : memref<128x128xf32, #tpu.memory_space<vmem>>, vector<128x128xf32>
    tpu.vector_store %arg4[%c0_16, %c0_17], %50 {strides = array<i32>} : memref<128x128xf32, #tpu.memory_space<vmem>>, vector<128x128xf32>,
    return
  }
  func.func @transform_0(%arg0: i32) -> (i32, i32) {
    %c0_i32 = arith.constant 0 : i32
    %c0_i32_0 = arith.constant 0 : i32
    return %arg0, %c0_i32 : i32, i32
  }
  func.func @transform_1(%arg0: i32) -> (i32, i32) {
    %c0_i32 = arith.constant 0 : i32
    %c0_i32_0 = arith.constant 0 : i32
    %c0_i32_1 = arith.constant 0 : i32
    return %c0_i32, %c0_i32_0 : i32, i32
  }
  func.func @transform_2(%arg0: i32) -> (i32, i32) {
    %c0_i32 = arith.constant 0 : i32
    %c0_i32_0 = arith.constant 0 : i32
    %c0_i32_1 = arith.constant 0 : i32
    return %c0_i32, %c0_i32_0 : i32, i32
  }
  func.func @transform_3(%arg0: i32) -> (i32, i32) {
    %c0_i32 = arith.constant 0 : i32
    %c0_i32_0 = arith.constant 0 : i32
    return %arg0, %c0_i32 : i32, i32
  }
}

</mosaic_0001>

<llo_original>
// kernel: patch_embedding_forward.1
$region0: #{patch_embedding_forward.1}
  #allocation0 [shape = 'u32[]', space=smem, size = 0x4, offset = 0x4, fixed_abs, tag = 'smem constant byte address 0x4 - core index']
  #allocation1 [shape = 'u32[144,128]{1,0:T(1,128)}', space=vmem, size = 0x12000, scoped, tag = 'internal scratch']
  %s0 = inlined_call_operand.vmem [shape: f32[128,16], index: 0, kind: input, shape index: {}]
  %s1 = inlined_call_operand.vmem [shape: bf16[16,128], index: 1, kind: input, shape index: {}]
  %s2 = inlined_call_operand.vmem [shape: f32[3,128], index: 2, kind: input, shape index: {}]
  %s3 = inlined_call_operand.hbm [shape: f32[128,128], index: 3, kind: output, shape index: {}]
  %s4 = sld [smem:[#allocation0]]
  $region22: #{patch_embedding_forward.1} parent=0
    _
  %s6 = ssub.s32 1, %s4
  %s7 = scalar_select 0, %s6, %s4
  $region1: #{patch_embedding_forward.1} parent=0
    #allocation2 [shape = 'u8[65536]{0}', space=vmem, size = 0x10000, scoped, tag = 'output window, operand 0, single buffered']
    #allocation3 [shape = 's32[1]{0}', space=sflag, size = 0x4, scoped, tag = 'scoped memory for patch_embedding_forward.1']
    %8 = vsyncpa [#allocation3], 0
    // Predicated region
    $region2: #{patch_embedding_forward.1} parent=1 // pred_check
      _
    $region3: #{patch_embedding_forward.1} parent=1 // pred_check_branch
      %10 = sbr.rel (0) target = $region5
    $region4: #{patch_embedding_forward.1} parent=1 // pred_region
      _
    $region5: #{patch_embedding_forward.1} parent=1 // pred_fallthru
      _
    // Predicated region
    $region6: #{patch_embedding_forward.1} parent=1 // pred_check
      _
    $region7: #{patch_embedding_forward.1} parent=1 // pred_check_branch
      %12 = sbr.rel (0) target = $region9
    $region8: #{patch_embedding_forward.1} parent=1 // pred_region
      _
    $region9: #{patch_embedding_forward.1} parent=1 // pred_fallthru
      _
    // Predicated region
    $region10: #{patch_embedding_forward.1} parent=1 // pred_check
      _
    $region11: #{patch_embedding_forward.1} parent=1 // pred_check_branch
      %14 = sbr.rel (0) target = $region13
    $region12: #{patch_embedding_forward.1} parent=1 // pred_region
      _
    $region13: #{patch_embedding_forward.1} parent=1 // pred_fallthru
      _
    %v16 = vld [vmem:[%s0] sm:$0xff]
    %v17 = vld [vmem:[%s0 + $0x8] sm:$0xff]
    %v18 = vld [vmem:[%s0 + $0x10] sm:$0xff]
    %v19 = vld [vmem:[%s0 + $0x18] sm:$0xff]
    %v20 = vld [vmem:[%s0 + $0x20] sm:$0xff]
    %v21 = vld [vmem:[%s0 + $0x28] sm:$0xff]
    %v22 = vld [vmem:[%s0 + $0x30] sm:$0xff]
    %v23 = vld [vmem:[%s0 + $0x38] sm:$0xff]
    %v24 = vld [vmem:[%s0 + $0x40] sm:$0xff]
    %v25 = vld [vmem:[%s0 + $0x48] sm:$0xff]
    %v26 = vld [vmem:[%s0 + $0x50] sm:$0xff]
    %v27 = vld [vmem:[%s0 + $0x58] sm:$0xff]
    %v28 = vld [vmem:[%s0 + $0x60] sm:$0xff]
    %v29 = vld [vmem:[%s0 + $0x68] sm:$0xff]
    %v30 = vld [vmem:[%s0 + $0x70] sm:$0xff]
    %v31 = vld [vmem:[%s0 + $0x78] sm:$0xff]
    %vm32 = vcmask 130048
    %v33 = vsel %vm32, %v16, 0.0
    %34 = vadd.xlane.f32.xlu0 %v33
    %v35 = vpop.xlane.xlu0 %34
    %v36 = vsel %vm32, %v17, 0.0
    %37 = vadd.xlane.f32.xlu0 %v36
    %v38 = vpop.xlane.xlu0 %37
    %v39 = vsel %vm32, %v18, 0.0
    %40 = vadd.xlane.f32.xlu0 %v39
    %v41 = vpop.xlane.xlu0 %40
    %v42 = vsel %vm32, %v19, 0.0
    %43 = vadd.xlane.f32.xlu0 %v42
    %v44 = vpop.xlane.xlu0 %43
    %v45 = vsel %vm32, %v20, 0.0
    %46 = vadd.xlane.f32.xlu0 %v45
    %v47 = vpop.xlane.xlu0 %46
    %v48 = vsel %vm32, %v21, 0.0
    %49 = vadd.xlane.f32.xlu0 %v48
    %v50 = vpop.xlane.xlu0 %49
    %v51 = vsel %vm32, %v22, 0.0
    %52 = vadd.xlane.f32.xlu0 %v51
    %v53 = vpop.xlane.xlu0 %52
    %v54 = vsel %vm32, %v23, 0.0
    %55 = vadd.xlane.f32.xlu0 %v54
    %v56 = vpop.xlane.xlu0 %55
    %v57 = vsel %vm32, %v24, 0.0
    %58 = vadd.xlane.f32.xlu0 %v57
    %v59 = vpop.xlane.xlu0 %58
    %v60 = vsel %vm32, %v25, 0.0
    %61 = vadd.xlane.f32.xlu0 %v60
    %v62 = vpop.xlane.xlu0 %61
    %v63 = vsel %vm32, %v26, 0.0
    %64 = vadd.xlane.f32.xlu0 %v63
    %v65 = vpop.xlane.xlu0 %64
    %v66 = vsel %vm32, %v27, 0.0
    %67 = vadd.xlane.f32.xlu0 %v66
    %v68 = vpop.xlane.xlu0 %67
    %v69 = vsel %vm32, %v28, 0.0
    %70 = vadd.xlane.f32.xlu0 %v69
    %v71 = vpop.xlane.xlu0 %70
    %v72 = vsel %vm32, %v29, 0.0
    %73 = vadd.xlane.f32.xlu0 %v72
    %v74 = vpop.xlane.xlu0 %73
    %v75 = vsel %vm32, %v30, 0.0
    %76 = vadd.xlane.f32.xlu0 %v75
    %v77 = vpop.xlane.xlu0 %76
    %v78 = vsel %vm32, %v31, 0.0
    %79 = vadd.xlane.f32.xlu0 %v78
    %v80 = vpop.xlane.xlu0 %79
    %v81 = vrcp.pop 16.0
    %v82 = vmul.f32 %v35, %v81
    %v83 = vmul.f32 %v38, %v81
    %v84 = vmul.f32 %v41, %v81
    %v85 = vmul.f32 %v44, %v81
    %v86 = vmul.f32 %v47, %v81
    %v87 = vmul.f32 %v50, %v81
    %v88 = vmul.f32 %v53, %v81
    %v89 = vmul.f32 %v56, %v81
    %v90 = vmul.f32 %v59, %v81
    %v91 = vmul.f32 %v62, %v81
    %v92 = vmul.f32 %v65, %v81
    %v93 = vmul.f32 %v68, %v81
    %v94 = vmul.f32 %v71, %v81
    %v95 = vmul.f32 %v74, %v81
    %v96 = vmul.f32 %v77, %v81
    %v97 = vmul.f32 %v80, %v81
    %v98 = vsub.f32 %v16, %v82
    %v99 = vsub.f32 %v17, %v83
    %v100 = vsub.f32 %v18, %v84
    %v101 = vsub.f32 %v19, %v85
    %v102 = vsub.f32 %v20, %v86
    %v103 = vsub.f32 %v21, %v87
    %v104 = vsub.f32 %v22, %v88
    %v105 = vsub.f32 %v23, %v89
    %v106 = vsub.f32 %v24, %v90
    %v107 = vsub.f32 %v25, %v91
    %v108 = vsub.f32 %v26, %v92
    %v109 = vsub.f32 %v27, %v93
    %v110 = vsub.f32 %v28, %v94
    %v111 = vsub.f32 %v29, %v95
    %v112 = vsub.f32 %v30, %v96
    %v113 = vsub.f32 %v31, %v97
    %v114 = vmul.f32 %v98, %v98
    %v115 = vmul.f32 %v99, %v99
    %v116 = vmul.f32 %v100, %v100
    %v117 = vmul.f32 %v101, %v101
    %v118 = vmul.f32 %v102, %v102
    %v119 = vmul.f32 %v103, %v103
    %v120 = vmul.f32 %v104, %v104
    %v121 = vmul.f32 %v105, %v105
    %v122 = vmul.f32 %v106, %v106
    %v123 = vmul.f32 %v107, %v107
    %v124 = vmul.f32 %v108, %v108
    %v125 = vmul.f32 %v109, %v109
    %v126 = vmul.f32 %v110, %v110
    %v127 = vmul.f32 %v111, %v111
    %v128 = vmul.f32 %v112, %v112
    %v129 = vmul.f32 %v113, %v113
    %v130 = vsel %vm32, %v114, 0.0
    %131 = vadd.xlane.f32.xlu0 %v130
    %v132 = vpop.xlane.xlu0 %131
    %v133 = vsel %vm32, %v115, 0.0
    %134 = vadd.xlane.f32.xlu0 %v133
    %v135 = vpop.xlane.xlu0 %134
    %v136 = vsel %vm32, %v116, 0.0
    %137 = vadd.xlane.f32.xlu0 %v136
    %v138 = vpop.xlane.xlu0 %137
    %v139 = vsel %vm32, %v117, 0.0
    %140 = vadd.xlane.f32.xlu0 %v139
    %v141 = vpop.xlane.xlu0 %140
    %v142 = vsel %vm32, %v118, 0.0
    %143 = vadd.xlane.f32.xlu0 %v142
    %v144 = vpop.xlane.xlu0 %143
    %v145 = vsel %vm32, %v119, 0.0
    %146 = vadd.xlane.f32.xlu0 %v145
    %v147 = vpop.xlane.xlu0 %146
    %v148 = vsel %vm32, %v120, 0.0
    %149 = vadd.xlane.f32.xlu0 %v148
    %v150 = vpop.xlane.xlu0 %149
    %v151 = vsel %vm32, %v121, 0.0
    %152 = vadd.xlane.f32.xlu0 %v151
    %v153 = vpop.xlane.xlu0 %152
    %v154 = vsel %vm32, %v122, 0.0
    %155 = vadd.xlane.f32.xlu0 %v154
    %v156 = vpop.xlane.xlu0 %155
    %v157 = vsel %vm32, %v123, 0.0
    %158 = vadd.xlane.f32.xlu0 %v157
    %v159 = vpop.xlane.xlu0 %158
    %v160 = vsel %vm32, %v124, 0.0
    %161 = vadd.xlane.f32.xlu0 %v160
    %v162 = vpop.xlane.xlu0 %161
    %v163 = vsel %vm32, %v125, 0.0
    %164 = vadd.xlane.f32.xlu0 %v163
    %v165 = vpop.xlane.xlu0 %164
    %v166 = vsel %vm32, %v126, 0.0
    %167 = vadd.xlane.f32.xlu0 %v166
    %v168 = vpop.xlane.xlu0 %167
    %v169 = vsel %vm32, %v127, 0.0
    %170 = vadd.xlane.f32.xlu0 %v169
    %v171 = vpop.xlane.xlu0 %170
    %v172 = vsel %vm32, %v128, 0.0
    %173 = vadd.xlane.f32.xlu0 %v172
    %v174 = vpop.xlane.xlu0 %173
    %v175 = vsel %vm32, %v129, 0.0
    %176 = vadd.xlane.f32.xlu0 %v175
    %v177 = vpop.xlane.xlu0 %176
    %v178 = vmul.f32 %v132, %v81
    %v179 = vmul.f32 %v135, %v81
    %v180 = vmul.f32 %v138, %v81
    %v181 = vmul.f32 %v141, %v81
    %v182 = vmul.f32 %v144, %v81
    %v183 = vmul.f32 %v147, %v81
    %v184 = vmul.f32 %v150, %v81
    %v185 = vmul.f32 %v153, %v81
    %v186 = vmul.f32 %v156, %v81
    %v187 = vmul.f32 %v159, %v81
    %v188 = vmul.f32 %v162, %v81
    %v189 = vmul.f32 %v165, %v81
    %v190 = vmul.f32 %v168, %v81
    %v191 = vmul.f32 %v171, %v81
    %v192 = vmul.f32 %v174, %v81
    %v193 = vmul.f32 %v177, %v81
    %v194 = vadd.f32 %v178, 1e-05
    %v195 = vadd.f32 %v179, 1e-05
    %v196 = vadd.f32 %v180, 1e-05
    %v197 = vadd.f32 %v181, 1e-05
    %v198 = vadd.f32 %v182, 1e-05
    %v199 = vadd.f32 %v183, 1e-05
    %v200 = vadd.f32 %v184, 1e-05
    %v201 = vadd.f32 %v185, 1e-05
    %v202 = vadd.f32 %v186, 1e-05
    %v203 = vadd.f32 %v187, 1e-05
    %v204 = vadd.f32 %v188, 1e-05
    %v205 = vadd.f32 %v189, 1e-05
    %v206 = vadd.f32 %v190, 1e-05
    %v207 = vadd.f32 %v191, 1e-05
    %v208 = vadd.f32 %v192, 1e-05
    %v209 = vadd.f32 %v193, 1e-05
    %v210 = vrsqrt.pop %v194
    %v211 = vrsqrt.pop %v195
    %v212 = vrsqrt.pop %v196
    %v213 = vrsqrt.pop %v197
    %v214 = vrsqrt.pop %v198
    %v215 = vrsqrt.pop %v199
    %v216 = vrsqrt.pop %v200
    %v217 = vrsqrt.pop %v201
    %v218 = vrsqrt.pop %v202
    %v219 = vrsqrt.pop %v203
    %v220 = vrsqrt.pop %v204
    %v221 = vrsqrt.pop %v205
    %v222 = vrsqrt.pop %v206
    %v223 = vrsqrt.pop %v207
    %v224 = vrsqrt.pop %v208
    %v225 = vrsqrt.pop %v209
    %v226 = vmul.f32 %v98, %v210
    %v227 = vmul.f32 %v99, %v211
    %v228 = vmul.f32 %v100, %v212
    %v229 = vmul.f32 %v101, %v213
    %v230 = vmul.f32 %v102, %v214
    %v231 = vmul.f32 %v103, %v215
    %v232 = vmul.f32 %v104, %v216
    %v233 = vmul.f32 %v105, %v217
    %v234 = vmul.f32 %v106, %v218
    %v235 = vmul.f32 %v107, %v219
    %v236 = vmul.f32 %v108, %v220
    %v237 = vmul.f32 %v109, %v221
    %v238 = vmul.f32 %v110, %v222
    %v239 = vmul.f32 %v111, %v223
    %v240 = vmul.f32 %v112, %v224
    %v241 = vmul.f32 %v113, %v225
    %v242 = vld [vmem:[%s1] sm:$0xf]
    %v243 = vld [vmem:[%s1 + $0x4] sm:$0xf]
    %v244 = vpack.c.bf16 %v227, %v226
    %v245 = vpack.c.bf16 %v229, %v228
    %v246 = vpack.c.bf16 %v231, %v230
    %v247 = vpack.c.bf16 %v233, %v232
    %v248 = vpack.c.bf16 %v235, %v234
    %v249 = vpack.c.bf16 %v237, %v236
    %v250 = vpack.c.bf16 %v239, %v238
    %v251 = vpack.c.bf16 %v241, %v240
    %v252 = vld [vmem:[%s2] sm:$0x7]
    %v253 = vlaneseq
    %v254 = vshrl.u32 %v253, 7
    %v255 = vsub.s32 0, %v254
    %v256 = vrot.slane %v252, %v255
    %v259 = vunpack.c.l.b16 %v242
    %v260 = vunpack.c.l.b16 %v243
    %v261 = vpack.c.b16 %v260, %v259
    %v264 = vsel %vm32, %v244, 0
    %v267 = vsel %vm32, %v245, 0
    %v270 = vsel %vm32, %v246, 0
    %v273 = vsel %vm32, %v247, 0
    %v276 = vsel %vm32, %v248, 0
    %v279 = vsel %vm32, %v249, 0
    %v282 = vsel %vm32, %v250, 0
    %v285 = vsel %vm32, %v251, 0
    %287 = vmatprep.subr.bf16.mxu0 0
    %288 = vmatpush1.bf16.msra.mxu0 %v261
    %289 = vmatprep.subr.bf16.mxu0 0
    %290 = vmatpush1.bf16.msra.mxu0 0
    %291 = vmatprep.subr.bf16.mxu0 0
    %292 = vmatpush1.bf16.msra.mxu0 0
    %293 = vmatprep.subr.bf16.mxu0 0
    %294 = vmatpush1.bf16.msra.mxu0 0
    %295 = vmatprep.subr.bf16.mxu0 0
    %296 = vmatpush1.bf16.msra.mxu0 0
    %297 = vmatprep.subr.bf16.mxu0 0
    %298 = vmatpush1.bf16.msra.mxu0 0
    %299 = vmatprep.subr.bf16.mxu0 0
    %300 = vmatpush1.bf16.msra.mxu0 0
    %301 = vmatprep.subr.bf16.mxu0 0
    %302 = vmatpush1.bf16.msra.mxu0 0
    %303 = vmatprep.subr.bf16.mxu0 0
    %304 = vmatpush1.bf16.msra.mxu0 0
    %305 = vmatprep.subr.bf16.mxu0 0
    %306 = vmatpush1.bf16.msra.mxu0 0
    %307 = vmatprep.subr.bf16.mxu0 0
    %308 = vmatpush1.bf16.msra.mxu0 0
    %309 = vmatprep.subr.bf16.mxu0 0
    %310 = vmatpush1.bf16.msra.mxu0 0
    %311 = vmatprep.subr.bf16.mxu0 0
    %312 = vmatpush1.bf16.msra.mxu0 0
    %313 = vmatprep.subr.bf16.mxu0 0
    %314 = vmatpush1.bf16.msra.mxu0 0
    %315 = vmatprep.subr.bf16.mxu0 0
    %316 = vmatpush1.bf16.msra.mxu0 0
    %317 = vmatprep.subr.bf16.mxu0 0
    %318 = vmatpush1.bf16.msra.mxu0 0
    %319 = vmatprep.mubr.bf16.mxu0 0
    %320 = vmatmul.mubr.bf16.gmra.mrb[0].mxu0 %v264
    %v321 = vpop.f32.mrb[0].mxu0
    %v322 = vadd.f32 %v256, %v321
    %v323 = vpop.f32.mrb[0].mxu0
    %v324 = vpop.f32.mrb[0].mxu0
    %v325 = vadd.f32 %v256, %v324
    %v326 = vpop.f32.mrb[0].mxu0
    %327 = vmatprep.mubr.bf16.mxu0 0
    %328 = vmatmul.mubr.bf16.gmra.mrb[0].mxu0 %v267
    %v329 = vpop.f32.mrb[0].mxu0
    %v330 = vadd.f32 %v256, %v329
    %v331 = vpop.f32.mrb[0].mxu0
    %v332 = vpop.f32.mrb[0].mxu0
    %v333 = vadd.f32 %v256, %v332
    %v334 = vpop.f32.mrb[0].mxu0
    %335 = vmatprep.mubr.bf16.mxu0 0
    %336 = vmatmul.mubr.bf16.gmra.mrb[0].mxu0 %v270
    %v337 = vpop.f32.mrb[0].mxu0
    %v338 = vadd.f32 %v256, %v337
    %v339 = vpop.f32.mrb[0].mxu0
    %v340 = vpop.f32.mrb[0].mxu0
    %v341 = vadd.f32 %v256, %v340
    %v342 = vpop.f32.mrb[0].mxu0
    %343 = vmatprep.mubr.bf16.mxu0 0
    %344 = vmatmul.mubr.bf16.gmra.mrb[0].mxu0 %v273
    %v345 = vpop.f32.mrb[0].mxu0
    %v346 = vadd.f32 %v256, %v345
    %v347 = vpop.f32.mrb[0].mxu0
    %v348 = vpop.f32.mrb[0].mxu0
    %v349 = vadd.f32 %v256, %v348
    %v350 = vpop.f32.mrb[0].mxu0
    %351 = vmatprep.mubr.bf16.mxu0 0
    %352 = vmatmul.mubr.bf16.gmra.mrb[0].mxu0 %v276
    %v353 = vpop.f32.mrb[0].mxu0
    %v354 = vadd.f32 %v256, %v353
    %v355 = vpop.f32.mrb[0].mxu0
    %v356 = vpop.f32.mrb[0].mxu0
    %v357 = vadd.f32 %v256, %v356
    %v358 = vpop.f32.mrb[0].mxu0
    %359 = vmatprep.mubr.bf16.mxu0 0
    %360 = vmatmul.mubr.bf16.gmra.mrb[0].mxu0 %v279
    %v361 = vpop.f32.mrb[0].mxu0
    %v362 = vadd.f32 %v256, %v361
    %v363 = vpop.f32.mrb[0].mxu0
    %v364 = vpop.f32.mrb[0].mxu0
    %v365 = vadd.f32 %v256, %v364
    %v366 = vpop.f32.mrb[0].mxu0
    %367 = vmatprep.mubr.bf16.mxu0 0
    %368 = vmatmul.mubr.bf16.gmra.mrb[0].mxu0 %v282
    %v369 = vpop.f32.mrb[0].mxu0
    %v370 = vadd.f32 %v256, %v369
    %v371 = vpop.f32.mrb[0].mxu0
    %v372 = vpop.f32.mrb[0].mxu0
    %v373 = vadd.f32 %v256, %v372
    %v374 = vpop.f32.mrb[0].mxu0
    %375 = vmatprep.mubr.bf16.mxu0 0
    %376 = vmatmul.mubr.bf16.gmra.mrb[0].mxu0 %v285
    %v377 = vpop.f32.mrb[0].mxu0
    %v378 = vadd.f32 %v256, %v377
    %v379 = vpop.f32.mrb[0].mxu0
    %v380 = vpop.f32.mrb[0].mxu0
    %v381 = vadd.f32 %v256, %v380
    %v382 = vpop.f32.mrb[0].mxu0
    %383 = vdwg.mxu0
    %384 = vadd.xlane.f32.xlu0 %v322
    %v385 = vpop.xlane.xlu0 %384
    %386 = vadd.xlane.f32.xlu0 %v325
    %v387 = vpop.xlane.xlu0 %386
    %388 = vadd.xlane.f32.xlu0 %v330
    %v389 = vpop.xlane.xlu0 %388
    %390 = vadd.xlane.f32.xlu0 %v333
    %v391 = vpop.xlane.xlu0 %390
    %392 = vadd.xlane.f32.xlu0 %v338
    %v393 = vpop.xlane.xlu0 %392
    %394 = vadd.xlane.f32.xlu0 %v341
    %v395 = vpop.xlane.xlu0 %394
    %396 = vadd.xlane.f32.xlu0 %v346
    %v397 = vpop.xlane.xlu0 %396
    %398 = vadd.xlane.f32.xlu0 %v349
    %v399 = vpop.xlane.xlu0 %398
    %400 = vadd.xlane.f32.xlu0 %v354
    %v401 = vpop.xlane.xlu0 %400
    %402 = vadd.xlane.f32.xlu0 %v357
    %v403 = vpop.xlane.xlu0 %402
    %404 = vadd.xlane.f32.xlu0 %v362
    %v405 = vpop.xlane.xlu0 %404
    %406 = vadd.xlane.f32.xlu0 %v365
    %v407 = vpop.xlane.xlu0 %406
    %408 = vadd.xlane.f32.xlu0 %v370
    %v409 = vpop.xlane.xlu0 %408
    %410 = vadd.xlane.f32.xlu0 %v373
    %v411 = vpop.xlane.xlu0 %410
    %412 = vadd.xlane.f32.xlu0 %v378
    %v413 = vpop.xlane.xlu0 %412
    %414 = vadd.xlane.f32.xlu0 %v381
    %v415 = vpop.xlane.xlu0 %414
    %v416 = vmul.f32 %v385, 0.03125
    %v417 = vmul.f32 %v387, 0.03125
    %v418 = vmul.f32 %v389, 0.03125
    %v419 = vmul.f32 %v391, 0.03125
    %v420 = vmul.f32 %v393, 0.03125
    %v421 = vmul.f32 %v395, 0.03125
    %v422 = vmul.f32 %v397, 0.03125
    %v423 = vmul.f32 %v399, 0.03125
    %v424 = vmul.f32 %v401, 0.03125
    %v425 = vmul.f32 %v403, 0.03125
    %v426 = vmul.f32 %v405, 0.03125
    %v427 = vmul.f32 %v407, 0.03125
    %v428 = vmul.f32 %v409, 0.03125
    %v429 = vmul.f32 %v411, 0.03125
    %v430 = vmul.f32 %v413, 0.03125
    %v431 = vmul.f32 %v415, 0.03125
    %v432 = vsub.f32 %v322, %v416
    %v433 = vsub.f32 %v325, %v417
    %v434 = vsub.f32 %v330, %v418
    %v435 = vsub.f32 %v333, %v419
    %v436 = vsub.f32 %v338, %v420
    %v437 = vsub.f32 %v341, %v421
    %v438 = vsub.f32 %v346, %v422
    %v439 = vsub.f32 %v349, %v423
    %v440 = vsub.f32 %v354, %v424
    %v441 = vsub.f32 %v357, %v425
    %v442 = vsub.f32 %v362, %v426
    %v443 = vsub.f32 %v365, %v427
    %v444 = vsub.f32 %v370, %v428
    %v445 = vsub.f32 %v373, %v429
    %v446 = vsub.f32 %v378, %v430
    %v447 = vsub.f32 %v381, %v431
    %v448 = vlaneseq
    %v449 = vand.u32 %v448, 127
    %vm450 = vcmp.lt.s32.totalorder %v449, 32
    %v451 = vmul.f32 %v432, %v432
    %v452 = vmul.f32 %v433, %v433
    %v453 = vmul.f32 %v434, %v434
    %v454 = vmul.f32 %v435, %v435
    %v455 = vmul.f32 %v436, %v436
    %v456 = vmul.f32 %v437, %v437
    %v457 = vmul.f32 %v438, %v438
    %v458 = vmul.f32 %v439, %v439
    %v459 = vmul.f32 %v440, %v440
    %v460 = vmul.f32 %v441, %v441
    %v461 = vmul.f32 %v442, %v442
    %v462 = vmul.f32 %v443, %v443
    %v463 = vmul.f32 %v444, %v444
    %v464 = vmul.f32 %v445, %v445
    %v465 = vmul.f32 %v446, %v446
    %v466 = vmul.f32 %v447, %v447
    %v467 = vsel %vm450, %v451, 0.0
    %v468 = vsel %vm450, %v452, 0.0
    %v469 = vsel %vm450, %v453, 0.0
    %v470 = vsel %vm450, %v454, 0.0
    %v471 = vsel %vm450, %v455, 0.0
    %v472 = vsel %vm450, %v456, 0.0
    %v473 = vsel %vm450, %v457, 0.0
    %v474 = vsel %vm450, %v458, 0.0
    %v475 = vsel %vm450, %v459, 0.0
    %v476 = vsel %vm450, %v460, 0.0
    %v477 = vsel %vm450, %v461, 0.0
    %v478 = vsel %vm450, %v462, 0.0
    %v479 = vsel %vm450, %v463, 0.0
    %v480 = vsel %vm450, %v464, 0.0
    %v481 = vsel %vm450, %v465, 0.0
    %v482 = vsel %vm450, %v466, 0.0
    %483 = vadd.xlane.f32.xlu0 %v467
    %v484 = vpop.xlane.xlu0 %483
    %485 = vadd.xlane.f32.xlu0 %v468
    %v486 = vpop.xlane.xlu0 %485
    %487 = vadd.xlane.f32.xlu0 %v469
    %v488 = vpop.xlane.xlu0 %487
    %489 = vadd.xlane.f32.xlu0 %v470
    %v490 = vpop.xlane.xlu0 %489
    %491 = vadd.xlane.f32.xlu0 %v471
    %v492 = vpop.xlane.xlu0 %491
    %493 = vadd.xlane.f32.xlu0 %v472
    %v494 = vpop.xlane.xlu0 %493
    %495 = vadd.xlane.f32.xlu0 %v473
    %v496 = vpop.xlane.xlu0 %495
    %497 = vadd.xlane.f32.xlu0 %v474
    %v498 = vpop.xlane.xlu0 %497
    %499 = vadd.xlane.f32.xlu0 %v475
    %v500 = vpop.xlane.xlu0 %499
    %501 = vadd.xlane.f32.xlu0 %v476
    %v502 = vpop.xlane.xlu0 %501
    %503 = vadd.xlane.f32.xlu0 %v477
    %v504 = vpop.xlane.xlu0 %503
    %505 = vadd.xlane.f32.xlu0 %v478
    %v506 = vpop.xlane.xlu0 %505
    %507 = vadd.xlane.f32.xlu0 %v479
    %v508 = vpop.xlane.xlu0 %507
    %509 = vadd.xlane.f32.xlu0 %v480
    %v510 = vpop.xlane.xlu0 %509
    %511 = vadd.xlane.f32.xlu0 %v481
    %v512 = vpop.xlane.xlu0 %511
    %513 = vadd.xlane.f32.xlu0 %v482
    %v514 = vpop.xlane.xlu0 %513
    %v515 = vmul.f32 %v484, 0.03125
    %v516 = vmul.f32 %v486, 0.03125
    %v517 = vmul.f32 %v488, 0.03125
    %v518 = vmul.f32 %v490, 0.03125
    %v519 = vmul.f32 %v492, 0.03125
    %v520 = vmul.f32 %v494, 0.03125
    %v521 = vmul.f32 %v496, 0.03125
    %v522 = vmul.f32 %v498, 0.03125
    %v523 = vmul.f32 %v500, 0.03125
    %v524 = vmul.f32 %v502, 0.03125
    %v525 = vmul.f32 %v504, 0.03125
    %v526 = vmul.f32 %v506, 0.03125
    %v527 = vmul.f32 %v508, 0.03125
    %v528 = vmul.f32 %v510, 0.03125
    %v529 = vmul.f32 %v512, 0.03125
    %v530 = vmul.f32 %v514, 0.03125
    %v531 = vadd.f32 %v515, 1e-05
    %v532 = vadd.f32 %v516, 1e-05
    %v533 = vadd.f32 %v517, 1e-05
    %v534 = vadd.f32 %v518, 1e-05
    %v535 = vadd.f32 %v519, 1e-05
    %v536 = vadd.f32 %v520, 1e-05
    %v537 = vadd.f32 %v521, 1e-05
    %v538 = vadd.f32 %v522, 1e-05
    %v539 = vadd.f32 %v523, 1e-05
    %v540 = vadd.f32 %v524, 1e-05
    %v541 = vadd.f32 %v525, 1e-05
    %v542 = vadd.f32 %v526, 1e-05
    %v543 = vadd.f32 %v527, 1e-05
    %v544 = vadd.f32 %v528, 1e-05
    %v545 = vadd.f32 %v529, 1e-05
    %v546 = vadd.f32 %v530, 1e-05
    %v547 = vrsqrt.pop %v531
    %v548 = vrsqrt.pop %v532
    %v549 = vrsqrt.pop %v533
    %v550 = vrsqrt.pop %v534
    %v551 = vrsqrt.pop %v535
    %v552 = vrsqrt.pop %v536
    %v553 = vrsqrt.pop %v537
    %v554 = vrsqrt.pop %v538
    %v555 = vrsqrt.pop %v539
    %v556 = vrsqrt.pop %v540
    %v557 = vrsqrt.pop %v541
    %v558 = vrsqrt.pop %v542
    %v559 = vrsqrt.pop %v543
    %v560 = vrsqrt.pop %v544
    %v561 = vrsqrt.pop %v545
    %v562 = vrsqrt.pop %v546
    %v563 = vmul.f32 %v432, %v547
    %v564 = vmul.f32 %v433, %v548
    %v565 = vmul.f32 %v434, %v549
    %v566 = vmul.f32 %v435, %v550
    %v567 = vmul.f32 %v436, %v551
    %v568 = vmul.f32 %v437, %v552
    %v569 = vmul.f32 %v438, %v553
    %v570 = vmul.f32 %v439, %v554
    %v571 = vmul.f32 %v440, %v555
    %v572 = vmul.f32 %v441, %v556
    %v573 = vmul.f32 %v442, %v557
    %v574 = vmul.f32 %v443, %v558
    %v575 = vmul.f32 %v444, %v559
    %v576 = vmul.f32 %v445, %v560
    %v577 = vmul.f32 %v446, %v561
    %v578 = vmul.f32 %v447, %v562
    %v579 = vlaneseq
    %v580 = vshrl.u32 %v579, 7
    %v581 = vsub.s32 1, %v580
    %v582 = vrot.slane %v252, %v581
    %v583 = vmul.f32 %v563, %v582
    %v584 = vmul.f32 %v564, %v582
    %v585 = vmul.f32 %v565, %v582
    %v586 = vmul.f32 %v566, %v582
    %v587 = vmul.f32 %v567, %v582
    %v588 = vmul.f32 %v568, %v582
    %v589 = vmul.f32 %v569, %v582
    %v590 = vmul.f32 %v570, %v582
    %v591 = vmul.f32 %v571, %v582
    %v592 = vmul.f32 %v572, %v582
    %v593 = vmul.f32 %v573, %v582
    %v594 = vmul.f32 %v574, %v582
    %v595 = vmul.f32 %v575, %v582
    %v596 = vmul.f32 %v576, %v582
    %v597 = vmul.f32 %v577, %v582
    %v598 = vmul.f32 %v578, %v582
    %v599 = vlaneseq
    %v600 = vshrl.u32 %v599, 7
    %v601 = vsub.s32 2, %v600
    %v602 = vrot.slane %v252, %v601
    %v603 = vadd.f32 %v583, %v602
    %v604 = vadd.f32 %v584, %v602
    %v605 = vadd.f32 %v585, %v602
    %v606 = vadd.f32 %v586, %v602
    %v607 = vadd.f32 %v587, %v602
    %v608 = vadd.f32 %v588, %v602
    %v609 = vadd.f32 %v589, %v602
    %v610 = vadd.f32 %v590, %v602
    %v611 = vadd.f32 %v591, %v602
    %v612 = vadd.f32 %v592, %v602
    %v613 = vadd.f32 %v593, %v602
    %v614 = vadd.f32 %v594, %v602
    %v615 = vadd.f32 %v595, %v602
    %v616 = vadd.f32 %v596, %v602
    %v617 = vadd.f32 %v597, %v602
    %v618 = vadd.f32 %v598, %v602
    %619 = vst [vmem:[#allocation2] sm:$0xff] %v603
    %620 = vst [vmem:[#allocation2 + $0x8] sm:$0xff] %v604
    %621 = vst [vmem:[#allocation2 + $0x10] sm:$0xff] %v605
    %622 = vst [vmem:[#allocation2 + $0x18] sm:$0xff] %v606
    %623 = vst [vmem:[#allocation2 + $0x20] sm:$0xff] %v607
    %624 = vst [vmem:[#allocation2 + $0x28] sm:$0xff] %v608
    %625 = vst [vmem:[#allocation2 + $0x30] sm:$0xff] %v609
    %626 = vst [vmem:[#allocation2 + $0x38] sm:$0xff] %v610
    %627 = vst [vmem:[#allocation2 + $0x40] sm:$0xff] %v611
    %628 = vst [vmem:[#allocation2 + $0x48] sm:$0xff] %v612
    %629 = vst [vmem:[#allocation2 + $0x50] sm:$0xff] %v613
    %630 = vst [vmem:[#allocation2 + $0x58] sm:$0xff] %v614
    %631 = vst [vmem:[#allocation2 + $0x60] sm:$0xff] %v615
    %632 = vst [vmem:[#allocation2 + $0x68] sm:$0xff] %v616
    %633 = vst [vmem:[#allocation2 + $0x70] sm:$0xff] %v617
    %634 = vst [vmem:[#allocation2 + $0x78] sm:$0xff] %v618
    // Predicated region
    $region14: #{patch_embedding_forward.1} parent=1 // pred_check
      _
    $region15: #{patch_embedding_forward.1} parent=1 // pred_check_branch
      %636 = sbr.rel (0) target = $region17
    $region16: #{patch_embedding_forward.1} parent=1 // pred_region
      %s638 = ssub.s32 2048, 2048
      %639 = vsyncadd [#allocation3], %s638
      %s640 = sshll.u32 [#allocation2], 4
      %s641 = int_to_ptr.vmem [resolvable:$true] %s640
      %646 = dma.vmem_to_hbm [thread:$0]  %s641, 2048, %s3, [#allocation3], 128, 128, 8
    $region17: #{patch_embedding_forward.1} parent=1 // pred_fallthru
      _
    // Predicated region
    $region18: #{patch_embedding_forward.1} parent=1 // pred_check
      _
    $region19: #{patch_embedding_forward.1} parent=1 // pred_check_branch
      %648 = sbr.rel (0) target = $region21
    $region20: #{patch_embedding_forward.1} parent=1 // pred_region
      %649 = dma.done [#allocation3], 2048
    $region21: #{patch_embedding_forward.1} parent=1 // pred_fallthru
      _
    %650 = vsyncpa [#allocation3], 1

</llo_original>
